<compile_context>
chip_gen: v5e
topology: v5e:2x2
jax: 0.10.0
libtpu: 0.0.40
codegen_flags: <defaults>
</compile_context>

<pallas_src>
import jax
import jax.numpy as jnp
from jax.experimental import pallas as pl
from jax.experimental.pallas import tpu as pltpu

EPS = 1e-12


def weightsum_kernel(x_ref, w_ref, y_ref):
    # x_ref: (TN, T, V, C) VMEM tile, w_ref: (T, C) f32, y_ref: (TN, 1) f32
    v_dim = x_ref.shape[2]

    # Streamed sum over the "variables" axis: unrolled slab-by-slab accumulation
    # keeps live state at (TN, T, C) and lets loads overlap the adds.
    x_sum = x_ref[:, :, 0, :].astype(jnp.float32)           # (TN, T, C)
    for v in range(1, v_dim):
        x_sum = x_sum + x_ref[:, :, v, :].astype(jnp.float32)

    w = w_ref[...].astype(jnp.float32)                       # (T, C)

    # a = max over tracks then channels (matches torch's double max)
    a = jnp.max(jnp.max(x_sum, axis=1), axis=1)              # (TN,)

    # exa = clamp(exp(x_sum - a), min=eps)
    exa = jnp.maximum(jnp.exp(x_sum - a[:, None, None]), EPS)  # (TN, T, C)

    # einsum('ntc,tc->n', exa, weights)
    weighted = exa * w[None, :, :]                           # (TN, T, C)
    s = jnp.sum(jnp.sum(weighted, axis=2), axis=1)           # (TN,)

    y_ref[...] = (a + jnp.log(s))[:, None]                   # (TN, 1)


def weightsum_forward(x, weights, *, block_rows=256):
    """x: (N, T, V, C) float32/bfloat16, weights: (T, C) -> y: (N,) float32."""
    n, t, v, c = x.shape
    w = weights.astype(jnp.float32)

    # Choose the batch-block size: default 256 rows (~4 MiB for T=4,V=8,C=128,f32),
    # double-buffered ~8 MiB -> safe on v5e/v6e/v7x. When gridded, the block row
    # count must be a multiple of 8 (output (TN, 1) sublane alignment).
    if n <= block_rows:
        tn = n
    else:
        tn = max(8, (block_rows // 8) * 8)
    n_pad = ((n + tn - 1) // tn) * tn
    x_p = x if n_pad == n else jnp.pad(x, ((0, n_pad - n), (0, 0), (0, 0), (0, 0)))
    grid = (n_pad // tn,)

    itemsize = jnp.dtype(x.dtype).itemsize
    cost = pl.CostEstimate(
        flops=int(n_pad * t * c * (v + 4)),
        transcendentals=int(n_pad * (t * c + 1)),
        bytes_accessed=int(n_pad * t * v * c * itemsize + t * c * 4 + n_pad * 4),
    )

    out = pl.pallas_call(
        weightsum_kernel,
        out_shape=jax.ShapeDtypeStruct((n_pad, 1), jnp.float32),
        grid=grid,
        in_specs=[
            # stream x batch-block by batch-block
            pl.BlockSpec((tn, t, v, c), lambda i: (i, 0, 0, 0)),
            # weights stay resident across the whole grid
            pl.BlockSpec((t, c), lambda i: (0, 0)),
        ],
        out_specs=pl.BlockSpec((tn, 1), lambda i: (i, 0)),
        compiler_params=pltpu.CompilerParams(
            dimension_semantics=("parallel",),      # megacore split on v7x
            vmem_limit_bytes=32 * 1024 * 1024,      # headroom, safe on all gens
        ),
        cost_estimate=cost,
    )(x_p, w)
    return out[:n, 0]


def init_weightsum_params(key, tracks, channels):
    """Deterministic init matching ProductSumLayer.__init__:
    weights = rand(T, C); weights /= clamp(weights.sum(dims=(0,1), keepdim=True), eps)"""
    w = jax.random.uniform(key, (tracks, channels), dtype=jnp.float32)
    w = w / jnp.maximum(jnp.sum(w, axis=(0, 1), keepdims=True), EPS)
    return w


def weightsum_reference(x, weights):
    """Plain-JAX reference for correctness checking."""
    xf = x.astype(jnp.float32)
    x_sum = jnp.sum(xf, axis=2)                                    # (N, T, C)
    a = jnp.max(jnp.max(x_sum, axis=1), axis=1)                    # (N,)
    exa = jnp.maximum(jnp.exp(x_sum - a[:, None, None]), EPS)      # (N, T, C)
    return a + jnp.log(jnp.einsum('ntc,tc->n', exa, weights))      # (N,)


if __name__ == "__main__":
    # small shapes: batch=2, tracks=4, variables=8, channels=128
    N, T, V, C = 2, 4, 8, 128

    key = jax.random.PRNGKey(0)
    k_w, k_x, k_x2 = jax.random.split(key, 3)

    weights = init_weightsum_params(k_w, T, C)
    # x plays the role of log-probabilities coming from earlier SUPR layers
    x = jax.random.normal(k_x, (N, T, V, C), dtype=jnp.float32) - 1.0

    y = jax.block_until_ready(weightsum_forward(x, weights))
    y_ref = weightsum_reference(x, weights)
    assert y.shape == (N,)
    assert jnp.allclose(y, y_ref, rtol=1e-5, atol=1e-5), (y, y_ref)

    # also exercise the gridded + padded pipeline path (N not a block multiple)
    N2 = 40
    x2 = jax.random.normal(k_x2, (N2, T, V, C), dtype=jnp.float32) - 1.0
    y2 = jax.block_until_ready(weightsum_forward(x2, weights, block_rows=16))
    y2_ref = weightsum_reference(x2, weights)
    assert y2.shape == (N2,)
    assert jnp.allclose(y2, y2_ref, rtol=1e-5, atol=1e-5), (y2, y2_ref)

    print("KERNEL_OK")
</pallas_src>

<mosaic_0001>
module attributes {stable_mosaic.version = 11 : i64} {
  func.func @weightsum_kernel(%arg0: i32, %arg1: memref<2x4x8x128xf32, #tpu.memory_space<vmem>>, %arg2: memref<4x128xf32, #tpu.memory_space<vmem>>, %arg3: memref<2x1xf32, #tpu.memory_space<vmem>>) attributes {dimension_semantics = [#tpu.dimension_semantics<parallel>], iteration_bounds = array<i64: 1>, scalar_prefetch = 0 : i64, scratch_operands = 0 : i64, tpu.core_type = #tpu.core_type<tc>, window_params = [{transform_indices = @transform_0, window_bounds = array<i64: 2, 4, 8, 128>}, {pipeline_mode = #tpu.pipeline_mode<synchronous>, transform_indices = @transform_1, window_bounds = array<i64: 4, 128>}, {transform_indices = @transform_2, window_bounds = array<i64: 2, 1>}]} {
    %c0 = arith.constant 0 : index
    %c0_0 = arith.constant 0 : index
    %c0_1 = arith.constant 0 : index
    %c0_2 = arith.constant 0 : index
    %0 = vector.load %arg1[%c0, %c0_0, %c0_1, %c0_2] : memref<2x4x8x128xf32, #tpu.memory_space<vmem>>, vector<2x4x1x128xf32>
    %1 = vector.shape_cast %0 : vector<2x4x1x128xf32> to vector<2x4x128xf32>
    %c0_3 = arith.constant 0 : index
    %c0_4 = arith.constant 0 : index
    %c1 = arith.constant 1 : index
    %c0_5 = arith.constant 0 : index
    %2 = vector.load %arg1[%c0_3, %c0_4, %c1, %c0_5] : memref<2x4x8x128xf32, #tpu.memory_space<vmem>>, vector<2x4x1x128xf32>
    %3 = vector.shape_cast %2 : vector<2x4x1x128xf32> to vector<2x4x128xf32>
    %4 = arith.addf %1, %3 : vector<2x4x128xf32>
    %c0_6 = arith.constant 0 : index
    %c0_7 = arith.constant 0 : index
    %c2 = arith.constant 2 : index
    %c0_8 = arith.constant 0 : index
    %5 = vector.load %arg1[%c0_6, %c0_7, %c2, %c0_8] : memref<2x4x8x128xf32, #tpu.memory_space<vmem>>, vector<2x4x1x128xf32>
    %6 = vector.shape_cast %5 : vector<2x4x1x128xf32> to vector<2x4x128xf32>
    %7 = arith.addf %4, %6 : vector<2x4x128xf32>
    %c0_9 = arith.constant 0 : index
    %c0_10 = arith.constant 0 : index
    %c3 = arith.constant 3 : index
    %c0_11 = arith.constant 0 : index
    %8 = vector.load %arg1[%c0_9, %c0_10, %c3, %c0_11] : memref<2x4x8x128xf32, #tpu.memory_space<vmem>>, vector<2x4x1x128xf32>
    %9 = vector.shape_cast %8 : vector<2x4x1x128xf32> to vector<2x4x128xf32>
    %10 = arith.addf %7, %9 : vector<2x4x128xf32>
    %c0_12 = arith.constant 0 : index
    %c0_13 = arith.constant 0 : index
    %c4 = arith.constant 4 : index
    %c0_14 = arith.constant 0 : index
    %11 = vector.load %arg1[%c0_12, %c0_13, %c4, %c0_14] : memref<2x4x8x128xf32, #tpu.memory_space<vmem>>, vector<2x4x1x128xf32>
    %12 = vector.shape_cast %11 : vector<2x4x1x128xf32> to vector<2x4x128xf32>
    %13 = arith.addf %10, %12 : vector<2x4x128xf32>
    %c0_15 = arith.constant 0 : index
    %c0_16 = arith.constant 0 : index
    %c5 = arith.constant 5 : index
    %c0_17 = arith.constant 0 : index
    %14 = vector.load %arg1[%c0_15, %c0_16, %c5, %c0_17] : memref<2x4x8x128xf32, #tpu.memory_space<vmem>>, vector<2x4x1x128xf32>
    %15 = vector.shape_cast %14 : vector<2x4x1x128xf32> to vector<2x4x128xf32>
    %16 = arith.addf %13, %15 : vector<2x4x128xf32>
    %c0_18 = arith.constant 0 : index
    %c0_19 = arith.constant 0 : index
    %c6 = arith.constant 6 : index
    %c0_20 = arith.constant 0 : index
    %17 = vector.load %arg1[%c0_18, %c0_19, %c6, %c0_20] : memref<2x4x8x128xf32, #tpu.memory_space<vmem>>, vector<2x4x1x128xf32>
    %18 = vector.shape_cast %17 : vector<2x4x1x128xf32> to vector<2x4x128xf32>
    %19 = arith.addf %16, %18 : vector<2x4x128xf32>
    %c0_21 = arith.constant 0 : index
    %c0_22 = arith.constant 0 : index
    %c7 = arith.constant 7 : index
    %c0_23 = arith.constant 0 : index
    %20 = vector.load %arg1[%c0_21, %c0_22, %c7, %c0_23] : memref<2x4x8x128xf32, #tpu.memory_space<vmem>>, vector<2x4x1x128xf32>
    %21 = vector.shape_cast %20 : vector<2x4x1x128xf32> to vector<2x4x128xf32>
    %22 = arith.addf %19, %21 : vector<2x4x128xf32>
    %c0_24 = arith.constant 0 : index
    %c0_25 = arith.constant 0 : index
    %23 = vector.load %arg2[%c0_24, %c0_25] : memref<4x128xf32, #tpu.memory_space<vmem>>, vector<4x128xf32>
    %cst = arith.constant dense<0xFF800000> : vector<2x128xf32>
    %24 = vector.multi_reduction <maximumf>, %22, %cst [1] : vector<2x4x128xf32> to vector<2x128xf32>
    %cst_26 = arith.constant dense<0xFF800000> : vector<2xf32>
    %25 = vector.multi_reduction <maximumf>, %24, %cst_26 [1] : vector<2x128xf32> to vector<2xf32>
    %26 = vector.shape_cast %25 : vector<2xf32> to vector<2x1x1xf32>
    %27 = vector.broadcast %26 : vector<2x1x1xf32> to vector<2x4x128xf32>
    %28 = arith.subf %22, %27 : vector<2x4x128xf32>
    %29 = math.exp %28 : vector<2x4x128xf32>
    %cst_27 = arith.constant 9.99999996E-13 : f32
    %30 = vector.broadcast %cst_27 : f32 to vector<2x4x128xf32>
    %31 = arith.maximumf %29, %30 : vector<2x4x128xf32>
    %32 = vector.shape_cast %23 : vector<4x128xf32> to vector<1x4x128xf32>
    %33 = vector.broadcast %32 : vector<1x4x128xf32> to vector<2x4x128xf32>
    %34 = arith.mulf %31, %33 : vector<2x4x128xf32>
    %cst_28 = arith.constant dense<0.000000e+00> : vector<2x4xf32>
    %35 = vector.multi_reduction <add>, %34, %cst_28 [2] : vector<2x4x128xf32> to vector<2x4xf32>
    %cst_29 = arith.constant dense<0.000000e+00> : vector<2xf32>
    %36 = vector.multi_reduction <add>, %35, %cst_29 [1] : vector<2x4xf32> to vector<2xf32>
    %37 = math.log %36 : vector<2xf32>
    %38 = arith.addf %25, %37 : vector<2xf32>
    %39 = vector.shape_cast %38 : vector<2xf32> to vector<2x1xf32>
    %c0_30 = arith.constant 0 : index
    %c0_31 = arith.constant 0 : index
    %40 = vector.load %arg3[%c0_30, %c0_31] : memref<2x1xf32, #tpu.memory_space<vmem>>, vector<2x1xf32>
    tpu.vector_store %arg3[%c0_30, %c0_31], %39 {strides = array<i32>} : memref<2x1xf32, #tpu.memory_space<vmem>>, vector<2x1xf32>,
    return
  }
  func.func @transform_0(%arg0: i32) -> (i32, i32, i32, i32) {
    %c0_i32 = arith.constant 0 : i32
    %c0_i32_0 = arith.constant 0 : i32
    %c0_i32_1 = arith.constant 0 : i32
    %c0_i32_2 = arith.constant 0 : i32
    return %arg0, %c0_i32, %c0_i32_0, %c0_i32_1 : i32, i32, i32, i32
  }
  func.func @transform_1(%arg0: i32) -> (i32, i32) {
    %c0_i32 = arith.constant 0 : i32
    %c0_i32_0 = arith.constant 0 : i32
    %c0_i32_1 = arith.constant 0 : i32
    return %c0_i32, %c0_i32_0 : i32, i32
  }
  func.func @transform_2(%arg0: i32) -> (i32, i32) {
    %c0_i32 = arith.constant 0 : i32
    %c0_i32_0 = arith.constant 0 : i32
    return %arg0, %c0_i32 : i32, i32
  }
}

</mosaic_0001>

<llo_original>
// kernel: tpu_custom_call.1
$region0: #{tpu_custom_call.1}
  #allocation0 [shape = 'u32[]', space=smem, size = 0x4, offset = 0x4, fixed_abs, tag = 'smem constant byte address 0x4 - core index']
  #allocation1 [shape = 'u32[72,128]{1,0:T(1,128)}', space=vmem, size = 0x9000, scoped, tag = 'internal scratch']
  %s0 = inlined_call_operand.hbm [shape: f32[2,4,8,128], index: 0, kind: input, shape index: {}]
  %s1 = inlined_call_operand.hbm [shape: f32[4,128], index: 1, kind: input, shape index: {}]
  %s2 = inlined_call_operand.vmem [shape: f32[2,1], index: 2, kind: output, shape index: {}]
  %s3 = sld [smem:[#allocation0]]
  $region26: #{tpu_custom_call.1} parent=0
    _
  %s5 = ssub.s32 1, %s3
  %s6 = scalar_select 0, %s5, %s3
  $region1: #{tpu_custom_call.1} parent=0
    #allocation2 [shape = 'u8[32768]{0}', space=vmem, size = 0x8000, scoped, tag = 'input window, operand 0, single buffered']
    #allocation3 [shape = 's32[1]{0}', space=sflag, size = 0x4, scoped, tag = 'scoped memory for tpu_custom_call.1']
    #allocation4 [shape = 'u8[2048]{0}', space=vmem, size = 0x800, scoped, tag = 'input window, operand 1, single buffered']
    #allocation5 [shape = 's32[1]{0}', space=sflag, size = 0x4, scoped, tag = 'scoped memory for tpu_custom_call.1']
    %7 = vsyncpa [#allocation3], 0
    %8 = vsyncpa [#allocation5], 0
    // Predicated region
    $region2: #{tpu_custom_call.1} parent=1 // pred_check
      _
    $region3: #{tpu_custom_call.1} parent=1 // pred_check_branch
      %10 = sbr.rel (0) target = $region5
    $region4: #{tpu_custom_call.1} parent=1 // pred_region
      %12 = vsyncadd [#allocation3], 0
      %s13 = sshll.u32 %s0, 4
      %s14 = int_to_ptr.hbm [resolvable:$true] %s13
      %s15 = sshll.u32 [#allocation2], 4
      %s16 = int_to_ptr.vmem [resolvable:$true] %s15
      %21 = dma.hbm_to_vmem [thread:$0]  %s14, 1024, %s16, [#allocation3], 128, 128, 8
    $region5: #{tpu_custom_call.1} parent=1 // pred_fallthru
      _
    // Predicated region
    $region6: #{tpu_custom_call.1} parent=1 // pred_check
      _
    $region7: #{tpu_custom_call.1} parent=1 // pred_check_branch
      %23 = sbr.rel (0) target = $region9
    $region8: #{tpu_custom_call.1} parent=1 // pred_region
      %25 = vsyncadd [#allocation5], 0
      %s27 = sshll.u32 %s1, 4
      %s28 = int_to_ptr.hbm [resolvable:$true] %s27
      %s29 = sshll.u32 [#allocation4], 4
      %s30 = int_to_ptr.vmem [resolvable:$true] %s29
      %32 = dma.hbm_to_vmem [thread:$0]  %s28, 64, %s30, [#allocation5]
    $region9: #{tpu_custom_call.1} parent=1 // pred_fallthru
      _
    // Predicated region
    $region10: #{tpu_custom_call.1} parent=1 // pred_check
      _
    $region11: #{tpu_custom_call.1} parent=1 // pred_check_branch
      %34 = sbr.rel (0) target = $region13
    $region12: #{tpu_custom_call.1} parent=1 // pred_region
      %36 = dma.done [#allocation3], 1024
    $region13: #{tpu_custom_call.1} parent=1 // pred_fallthru
      _
    // Predicated region
    $region14: #{tpu_custom_call.1} parent=1 // pred_check
      _
    $region15: #{tpu_custom_call.1} parent=1 // pred_check_branch
      %38 = sbr.rel (0) target = $region17
    $region16: #{tpu_custom_call.1} parent=1 // pred_region
      %40 = dma.done [#allocation5], 64
    $region17: #{tpu_custom_call.1} parent=1 // pred_fallthru
      _
    %v41 = vld [vmem:[#allocation2] sm:$0x1]
    %v42 = vld [vmem:[#allocation2 + $0x8] sm:$0x1]
    %v43 = vld [vmem:[#allocation2 + $0x10] sm:$0x1]
    %v44 = vld [vmem:[#allocation2 + $0x18] sm:$0x1]
    %v45 = vld [vmem:[#allocation2 + $0x20] sm:$0x1]
    %v46 = vld [vmem:[#allocation2 + $0x28] sm:$0x1]
    %v47 = vld [vmem:[#allocation2 + $0x30] sm:$0x1]
    %v48 = vld [vmem:[#allocation2 + $0x38] sm:$0x1]
    %v49 = vld [vmem:[#allocation2 + $0x1] sm:$0x1]
    %v50 = vld [vmem:[#allocation2 + $0x9] sm:$0x1]
    %v51 = vld [vmem:[#allocation2 + $0x11] sm:$0x1]
    %v52 = vld [vmem:[#allocation2 + $0x19] sm:$0x1]
    %v53 = vld [vmem:[#allocation2 + $0x21] sm:$0x1]
    %v54 = vld [vmem:[#allocation2 + $0x29] sm:$0x1]
    %v55 = vld [vmem:[#allocation2 + $0x31] sm:$0x1]
    %v56 = vld [vmem:[#allocation2 + $0x39] sm:$0x1]
    %v57 = vadd.f32 %v41, %v49
    %v58 = vadd.f32 %v42, %v50
    %v59 = vadd.f32 %v43, %v51
    %v60 = vadd.f32 %v44, %v52
    %v61 = vadd.f32 %v45, %v53
    %v62 = vadd.f32 %v46, %v54
    %v63 = vadd.f32 %v47, %v55
    %v64 = vadd.f32 %v48, %v56
    %v65 = vld [vmem:[#allocation2 + $0x2] sm:$0x1]
    %v66 = vld [vmem:[#allocation2 + $0xa] sm:$0x1]
    %v67 = vld [vmem:[#allocation2 + $0x12] sm:$0x1]
    %v68 = vld [vmem:[#allocation2 + $0x1a] sm:$0x1]
    %v69 = vld [vmem:[#allocation2 + $0x22] sm:$0x1]
    %v70 = vld [vmem:[#allocation2 + $0x2a] sm:$0x1]
    %v71 = vld [vmem:[#allocation2 + $0x32] sm:$0x1]
    %v72 = vld [vmem:[#allocation2 + $0x3a] sm:$0x1]
    %v73 = vadd.f32 %v57, %v65
    %v74 = vadd.f32 %v58, %v66
    %v75 = vadd.f32 %v59, %v67
    %v76 = vadd.f32 %v60, %v68
    %v77 = vadd.f32 %v61, %v69
    %v78 = vadd.f32 %v62, %v70
    %v79 = vadd.f32 %v63, %v71
    %v80 = vadd.f32 %v64, %v72
    %v81 = vld [vmem:[#allocation2 + $0x3] sm:$0x1]
    %v82 = vld [vmem:[#allocation2 + $0xb] sm:$0x1]
    %v83 = vld [vmem:[#allocation2 + $0x13] sm:$0x1]
    %v84 = vld [vmem:[#allocation2 + $0x1b] sm:$0x1]
    %v85 = vld [vmem:[#allocation2 + $0x23] sm:$0x1]
    %v86 = vld [vmem:[#allocation2 + $0x2b] sm:$0x1]
    %v87 = vld [vmem:[#allocation2 + $0x33] sm:$0x1]
    %v88 = vld [vmem:[#allocation2 + $0x3b] sm:$0x1]
    %v89 = vadd.f32 %v73, %v81
    %v90 = vadd.f32 %v74, %v82
    %v91 = vadd.f32 %v75, %v83
    %v92 = vadd.f32 %v76, %v84
    %v93 = vadd.f32 %v77, %v85
    %v94 = vadd.f32 %v78, %v86
    %v95 = vadd.f32 %v79, %v87
    %v96 = vadd.f32 %v80, %v88
    %v97 = vld [vmem:[#allocation2 + $0x4] sm:$0x1]
    %v98 = vld [vmem:[#allocation2 + $0xc] sm:$0x1]
    %v99 = vld [vmem:[#allocation2 + $0x14] sm:$0x1]
    %v100 = vld [vmem:[#allocation2 + $0x1c] sm:$0x1]
    %v101 = vld [vmem:[#allocation2 + $0x24] sm:$0x1]
    %v102 = vld [vmem:[#allocation2 + $0x2c] sm:$0x1]
    %v103 = vld [vmem:[#allocation2 + $0x34] sm:$0x1]
    %v104 = vld [vmem:[#allocation2 + $0x3c] sm:$0x1]
    %v105 = vadd.f32 %v89, %v97
    %v106 = vadd.f32 %v90, %v98
    %v107 = vadd.f32 %v91, %v99
    %v108 = vadd.f32 %v92, %v100
    %v109 = vadd.f32 %v93, %v101
    %v110 = vadd.f32 %v94, %v102
    %v111 = vadd.f32 %v95, %v103
    %v112 = vadd.f32 %v96, %v104
    %v113 = vld [vmem:[#allocation2 + $0x5] sm:$0x1]
    %v114 = vld [vmem:[#allocation2 + $0xd] sm:$0x1]
    %v115 = vld [vmem:[#allocation2 + $0x15] sm:$0x1]
    %v116 = vld [vmem:[#allocation2 + $0x1d] sm:$0x1]
    %v117 = vld [vmem:[#allocation2 + $0x25] sm:$0x1]
    %v118 = vld [vmem:[#allocation2 + $0x2d] sm:$0x1]
    %v119 = vld [vmem:[#allocation2 + $0x35] sm:$0x1]
    %v120 = vld [vmem:[#allocation2 + $0x3d] sm:$0x1]
    %v121 = vadd.f32 %v105, %v113
    %v122 = vadd.f32 %v106, %v114
    %v123 = vadd.f32 %v107, %v115
    %v124 = vadd.f32 %v108, %v116
    %v125 = vadd.f32 %v109, %v117
    %v126 = vadd.f32 %v110, %v118
    %v127 = vadd.f32 %v111, %v119
    %v128 = vadd.f32 %v112, %v120
    %v129 = vld [vmem:[#allocation2 + $0x6] sm:$0x1]
    %v130 = vld [vmem:[#allocation2 + $0xe] sm:$0x1]
    %v131 = vld [vmem:[#allocation2 + $0x16] sm:$0x1]
    %v132 = vld [vmem:[#allocation2 + $0x1e] sm:$0x1]
    %v133 = vld [vmem:[#allocation2 + $0x26] sm:$0x1]
    %v134 = vld [vmem:[#allocation2 + $0x2e] sm:$0x1]
    %v135 = vld [vmem:[#allocation2 + $0x36] sm:$0x1]
    %v136 = vld [vmem:[#allocation2 + $0x3e] sm:$0x1]
    %v137 = vadd.f32 %v121, %v129
    %v138 = vadd.f32 %v122, %v130
    %v139 = vadd.f32 %v123, %v131
    %v140 = vadd.f32 %v124, %v132
    %v141 = vadd.f32 %v125, %v133
    %v142 = vadd.f32 %v126, %v134
    %v143 = vadd.f32 %v127, %v135
    %v144 = vadd.f32 %v128, %v136
    %v145 = vld [vmem:[#allocation2 + $0x7] sm:$0x1]
    %v146 = vld [vmem:[#allocation2 + $0xf] sm:$0x1]
    %v147 = vld [vmem:[#allocation2 + $0x17] sm:$0x1]
    %v148 = vld [vmem:[#allocation2 + $0x1f] sm:$0x1]
    %v149 = vld [vmem:[#allocation2 + $0x27] sm:$0x1]
    %v150 = vld [vmem:[#allocation2 + $0x2f] sm:$0x1]
    %v151 = vld [vmem:[#allocation2 + $0x37] sm:$0x1]
    %v152 = vld [vmem:[#allocation2 + $0x3f] sm:$0x1]
    %v153 = vadd.f32 %v137, %v145
    %v154 = vadd.f32 %v138, %v146
    %v155 = vadd.f32 %v139, %v147
    %v156 = vadd.f32 %v140, %v148
    %v157 = vadd.f32 %v141, %v149
    %v158 = vadd.f32 %v142, %v150
    %v159 = vadd.f32 %v143, %v151
    %v160 = vadd.f32 %v144, %v152
    %v161 = vld [vmem:[#allocation4] sm:$0xf]
    %vm162 = vcmask 1040384
    %v163 = vsel %vm162, %v153, -inf
    %v164 = vsel %vm162, %v154, -inf
    %v165 = vsel %vm162, %v155, -inf
    %v166 = vmax.f32 %v163, %v165
    %v167 = vsel %vm162, %v156, -inf
    %v168 = vmax.f32 %v164, %v167
    %v169 = vmax.f32 %v166, %v168
    %v170 = vsel %vm162, %v157, -inf
    %v171 = vsel %vm162, %v158, -inf
    %v172 = vsel %vm162, %v159, -inf
    %v173 = vmax.f32 %v170, %v172
    %v174 = vsel %vm162, %v160, -inf
    %v175 = vmax.f32 %v171, %v174
    %v176 = vmax.f32 %v173, %v175
    %v179 = vrot.slane %v176, 7
    %vm180 = vcmask 1041409
    %v181 = vsel %vm180, %v179, %v169
    %vm183 = vcmask 1041408
    %v184 = vsel %vm183, %v181, -inf
    %185 = vmax.xlane.f32.xlu0 %v184
    %v186 = vpop.xlane.xlu0 %185
    %v188 = vperm.slane %v186, 0
    %v189 = vperm.slane %v186, 1
    %v192 = vsub.f32 %v153, %v188
    %v193 = vsub.f32 %v154, %v188
    %v194 = vsub.f32 %v155, %v188
    %v195 = vsub.f32 %v156, %v188
    %v196 = vsub.f32 %v157, %v189
    %v197 = vsub.f32 %v158, %v189
    %v198 = vsub.f32 %v159, %v189
    %v199 = vsub.f32 %v160, %v189
    %v200 = vmul.f32 %v192, 1.442695
    %v201 = vpow.pop %v200
    %v202 = vmul.f32 %v193, 1.442695
    %v203 = vpow.pop %v202
    %v204 = vmul.f32 %v194, 1.442695
    %v205 = vpow.pop %v204
    %v206 = vmul.f32 %v195, 1.442695
    %v207 = vpow.pop %v206
    %v208 = vmul.f32 %v196, 1.442695
    %v209 = vpow.pop %v208
    %v210 = vmul.f32 %v197, 1.442695
    %v211 = vpow.pop %v210
    %v212 = vmul.f32 %v198, 1.442695
    %v213 = vpow.pop %v212
    %v214 = vmul.f32 %v199, 1.442695
    %v215 = vpow.pop %v214
    %v216 = vmax.f32 %v201, 1e-12
    %v217 = vmax.f32 %v203, 1e-12
    %v218 = vmax.f32 %v205, 1e-12
    %v219 = vmax.f32 %v207, 1e-12
    %v220 = vmax.f32 %v209, 1e-12
    %v221 = vmax.f32 %v211, 1e-12
    %v222 = vmax.f32 %v213, 1e-12
    %v223 = vmax.f32 %v215, 1e-12
    %v225 = vrot.slane %v161, 1
    %v226 = vrot.slane %v161, 2
    %v227 = vrot.slane %v161, 3
    %v232 = vmul.f32 %v216, %v161
    %v233 = vmul.f32 %v217, %v225
    %v234 = vmul.f32 %v218, %v226
    %v235 = vmul.f32 %v219, %v227
    %v236 = vmul.f32 %v220, %v161
    %v237 = vmul.f32 %v221, %v225
    %v238 = vmul.f32 %v222, %v226
    %v239 = vmul.f32 %v223, %v227
    %v248 = vrot.slane %v233, 7
    %v249 = vsel %vm180, %v248, %v232
    %v250 = vrot.slane %v234, 6
    %vm251 = vcmask 1042434
    %v252 = vsel %vm251, %v250, %v249
    %v253 = vrot.slane %v235, 5
    %vm254 = vcmask 1043459
    %v255 = vsel %vm254, %v253, %v252
    %v256 = vrot.slane %v237, 7
    %v257 = vsel %vm180, %v256, %v236
    %v258 = vrot.slane %v238, 6
    %v259 = vsel %vm251, %v258, %v257
    %v260 = vrot.slane %v239, 5
    %v261 = vsel %vm254, %v260, %v259
    %vm264 = vcmask 1043456
    %v265 = vsel %vm264, %v255, 0.0
    %266 = vadd.xlane.f32.xlu0 %v265
    %v267 = vpop.xlane.xlu0 %266
    %v268 = vsel %vm264, %v261, 0.0
    %269 = vadd.xlane.f32.xlu0 %v268
    %v270 = vpop.xlane.xlu0 %269
    %v273 = vlaneseq
    %v274 = vand.u32 %v273, 127
    %v275 = vperm.slane %v267, %v274
    %v276 = vperm.slane %v270, %v274
    %v277 = vsel %vm180, %v276, %v275
    %vm279 = vcmask 25600
    %v280 = vsel %vm279, %v277, 0.0
    %281 = vadd.xlane.f32.xlu0 %v280
    %v282 = vpop.xlane.xlu0 %281
    %v283 = vlog2.pop %v282
    %v284 = vmul.f32 %v283, 0.6931472
    %v285 = vadd.f32 %v186, %v284
    %vm286 = vcmask 1024
    %287 = vst.msk [vmem:[%s2] sm:$0x3] %vm286, %v285
    // Predicated region
    $region18: #{tpu_custom_call.1} parent=1 // pred_check
      _
    $region19: #{tpu_custom_call.1} parent=1 // pred_check_branch
      %289 = sbr.rel (0) target = $region21
    $region20: #{tpu_custom_call.1} parent=1 // pred_region
      _
    $region21: #{tpu_custom_call.1} parent=1 // pred_fallthru
      _
    // Predicated region
    $region22: #{tpu_custom_call.1} parent=1 // pred_check
      _
    $region23: #{tpu_custom_call.1} parent=1 // pred_check_branch
      %291 = sbr.rel (0) target = $region25
    $region24: #{tpu_custom_call.1} parent=1 // pred_region
      _
    $region25: #{tpu_custom_call.1} parent=1 // pred_fallthru
      _
    %292 = vsyncpa [#allocation3], 1
    %293 = vsyncpa [#allocation5], 1

</llo_original>
